<compile_context>
chip_gen: v7x
topology: tpu7x:2x2x1
jax: 0.10.0
libtpu: 0.0.40
codegen_flags: <defaults>
</compile_context>

<pallas_src>
import functools
import math

import jax
import jax.numpy as jnp
from jax.experimental import pallas as pl
from jax.experimental.pallas import tpu as pltpu


def _round_up(x, m):
    return (x + m - 1) // m * m


def _cdiv(a, b):
    return (a + b - 1) // b


def _device_kind():
    try:
        return jax.devices()[0].device_kind.lower()
    except Exception:
        return ""


def _vmem_capacity_bytes(kind):
    cap = None
    try:
        cap = int(getattr(pltpu.get_tpu_info(), "vmem_capacity_bytes"))
    except Exception:
        cap = None
    if cap and cap > (8 << 20):
        return cap
    if "v7" in kind or "7x" in kind:
        return 64 << 20        # v7x: 64 MiB per TensorCore
    return 128 << 20           # v5e / v6e: 128 MiB


def _pick_tile_b(batch, kind):
    """Batch tile: multiple of 8, minimal padding; 256 on v6e; >=2 tiles on v7x."""
    max_tile = 256 if "v6" in kind else 128
    b8 = _round_up(max(batch, 1), 8)
    if b8 <= max_tile:
        tile_b = b8
    else:
        n_tiles = _cdiv(batch, max_tile)
        tile_b = _round_up(_cdiv(batch, n_tiles), 8)
    if ("v7" in kind or "7x" in kind) and batch > 8:
        # both TensorCores need >= 2 blocks on the "parallel" batch axis
        if _round_up(batch, tile_b) // tile_b < 2:
            tile_b = _round_up(_cdiv(batch, 2), 8)
    return tile_b


# --------------------------------------------------------------------------
# Kernels
# --------------------------------------------------------------------------
def _mlp_resident_kernel(x_ref, wh_ref, bh_ref, wf_ref, bf_ref, out_ref, *,
                         num_mlp_layers):
    """Grid = (batch_tiles,). All weights VMEM-resident; layers unrolled in-kernel."""
    h = x_ref[...]                                           # bf16 (tile_b, E)
    for l in range(num_mlp_layers):                          # static unroll
        y = jnp.dot(h, wh_ref[l], preferred_element_type=jnp.float32)
        y = y + bh_ref[l]                                    # f32 bias
        h = jnp.maximum(y, 0.0).astype(jnp.bfloat16)         # dropout == identity (eval)
    logits = jnp.dot(h, wf_ref[...], preferred_element_type=jnp.float32) + bf_ref[...]
    # Padded class columns carry a -1e30 bias -> exp() == 0 -> exact log_softmax.
    m = jnp.max(logits, axis=-1, keepdims=True)
    s = logits - m
    lse = jnp.log(jnp.sum(jnp.exp(s), axis=-1, keepdims=True))
    out_ref[...] = (s - lse).astype(out_ref.dtype)


def _mlp_streaming_kernel(x_ref, wh_ref, bh_ref, wf_ref, bf_ref, out_ref, h_ref, *,
                          num_mlp_layers):
    """Grid = (L+1, batch_tiles), LAYER OUTER: each W_l streamed from HBM once.

    Activations are carried across layers in the (nb, tile_b, E) bf16 scratch.
    The output block is only meaningful at l == L; earlier flushes of that block
    are overwritten by the final l == L flush (pure write traffic, not a bug).
    """
    l = pl.program_id(0)
    b = pl.program_id(1)
    L = num_mlp_layers

    @pl.when(l == 0)
    def _init():
        h_ref[b] = x_ref[...]                                # bf16 activation carry

    @pl.when(l < L)
    def _hidden():
        y = jnp.dot(h_ref[b], wh_ref[...],
                    preferred_element_type=jnp.float32) + bh_ref[...]
        h_ref[b] = jnp.maximum(y, 0.0).astype(jnp.bfloat16)  # dropout == identity (eval)

    @pl.when(l == L)
    def _final():
        logits = jnp.dot(h_ref[b], wf_ref[...],
                         preferred_element_type=jnp.float32) + bf_ref[...]
        m = jnp.max(logits, axis=-1, keepdims=True)
        s = logits - m
        lse = jnp.log(jnp.sum(jnp.exp(s), axis=-1, keepdims=True))
        out_ref[...] = (s - lse).astype(out_ref.dtype)


# --------------------------------------------------------------------------
# Wrapper
# --------------------------------------------------------------------------
def mlp_decoder_forward(graph_emb, params, num_mlp_layers, *, force_streaming=False):
    """params = [(W0, b0), ..., (W_{L-1}, b_{L-1}), (Wf, bf)], W: (in,out), b: (1,out)."""
    batch, emb_dim = graph_emb.shape
    num_classes = params[-1][0].shape[1]
    L = num_mlp_layers

    kind = _device_kind()
    vmem_cap = _vmem_capacity_bytes(kind)

    c_pad = _round_up(max(num_classes, 1), 128)              # lane-dense output
    tile_b = _pick_tile_b(batch, kind)
    b_pad = _round_up(batch, tile_b)
    nb = b_pad // tile_b

    # bf16 MXU operands from the start; f32 accumulation happens in-kernel.
    x = graph_emb.astype(jnp.bfloat16)
    if b_pad != batch:
        x = jnp.pad(x, ((0, b_pad - batch), (0, 0)))

    if L > 0:
        wh = jnp.stack([params[i][0] for i in range(L)]).astype(jnp.bfloat16)  # (L,E,E)
        bh = jnp.stack([params[i][1] for i in range(L)]).astype(jnp.float32)   # (L,1,E)
    else:
        wh = jnp.zeros((1, emb_dim, emb_dim), jnp.bfloat16)
        bh = jnp.zeros((1, 1, emb_dim), jnp.float32)

    wf, bf = params[-1]
    wf_p = jnp.zeros((emb_dim, c_pad), jnp.bfloat16).at[:, :num_classes].set(
        wf.astype(jnp.bfloat16))
    bf_p = jnp.full((1, c_pad), -1e30, jnp.float32).at[:, :num_classes].set(
        bf.reshape(1, -1).astype(jnp.float32))

    # --- VMEM footprint (x2 for pipelined blocks, x1 for scratch/temporaries) ---
    x_blk = tile_b * emb_dim * 2
    out_blk = tile_b * c_pad * 4
    wf_blk = emb_dim * c_pad * 2
    bf_blk = c_pad * 4
    wh_all = int(wh.size) * 2
    bh_all = int(bh.size) * 4
    wh_blk = emb_dim * emb_dim * 2
    bh_blk = emb_dim * 4
    tmp = 4 * tile_b * max(emb_dim, c_pad) * 4               # in-kernel f32 temporaries

    resident_bytes = 2 * (x_blk + wh_all + bh_all + wf_blk + bf_blk + out_blk) + tmp
    budget = max(vmem_cap - (16 << 20), vmem_cap // 2)
    use_resident = (not force_streaming) and (resident_bytes + (4 << 20) <= budget)

    if use_resident:
        grid = (nb,)
        in_specs = [
            pl.BlockSpec((tile_b, emb_dim), lambda b: (b, 0)),       # x tile
            pl.BlockSpec(tuple(wh.shape), lambda b: (0, 0, 0)),      # all hidden W (resident)
            pl.BlockSpec(tuple(bh.shape), lambda b: (0, 0, 0)),      # all hidden b (resident)
            pl.BlockSpec((emb_dim, c_pad), lambda b: (0, 0)),        # Wf (resident)
            pl.BlockSpec((1, c_pad), lambda b: (0, 0)),              # bf (resident)
        ]
        out_spec = pl.BlockSpec((tile_b, c_pad), lambda b: (b, 0))
        scratch_shapes = []
        dims = ("parallel",)
        kernel = functools.partial(_mlp_resident_kernel, num_mlp_layers=L)
        footprint = resident_bytes
        bytes_accessed = (int(x.size) * 2 + wh_all + bh_all
                          + int(wf_p.size) * 2 + int(bf_p.size) * 4
                          + b_pad * c_pad * 4)
    else:
        lmax = max(L - 1, 0)
        grid = (L + 1, nb)                                   # layer-outer, batch-inner
        in_specs = [
            pl.BlockSpec((tile_b, emb_dim), lambda l, b: (b, 0)),
            pl.BlockSpec((None, emb_dim, emb_dim),
                         lambda l, b: (jnp.minimum(l, lmax), 0, 0)),
            pl.BlockSpec((None, 1, emb_dim),
                         lambda l, b: (jnp.minimum(l, lmax), 0, 0)),
            pl.BlockSpec((emb_dim, c_pad), lambda l, b: (0, 0)),
            pl.BlockSpec((1, c_pad), lambda l, b: (0, 0)),
        ]
        out_spec = pl.BlockSpec((tile_b, c_pad), lambda l, b: (b, 0))
        scratch_shapes = [pltpu.VMEM((nb, tile_b, emb_dim), jnp.bfloat16)]
        dims = ("arbitrary", "arbitrary")
        kernel = functools.partial(_mlp_streaming_kernel, num_mlp_layers=L)
        footprint = (2 * (x_blk + wh_blk + bh_blk + wf_blk + bf_blk + out_blk)
                     + nb * tile_b * emb_dim * 2 + tmp)
        bytes_accessed = ((L + 1) * int(x.size) * 2 + wh_all + bh_all
                          + int(wf_p.size) * 2 + int(bf_p.size) * 4
                          + (L + 1) * b_pad * c_pad * 4)

    vmem_limit = int(min(max(footprint + (4 << 20), 32 << 20), vmem_cap - (2 << 20)))

    cost = pl.CostEstimate(
        flops=int(2 * b_pad * emb_dim * emb_dim * L + 2 * b_pad * emb_dim * c_pad),
        transcendentals=int(b_pad * (c_pad + 1)),
        bytes_accessed=int(bytes_accessed),
    )

    out_padded = pl.pallas_call(
        kernel,
        out_shape=jax.ShapeDtypeStruct((b_pad, c_pad), jnp.float32),
        grid=grid,
        in_specs=in_specs,
        out_specs=out_spec,
        scratch_shapes=scratch_shapes,
        compiler_params=pltpu.CompilerParams(
            dimension_semantics=dims,
            vmem_limit_bytes=vmem_limit,
        ),
        cost_estimate=cost,
    )(x, wh, bh, wf_p, bf_p)

    return out_padded[:batch, :num_classes]


# --------------------------------------------------------------------------
# Init / reference (mirror the PyTorch module)
# --------------------------------------------------------------------------
def init_params(key, emb_dim, num_mlp_layers, num_classes):
    """Mirror reset_parameters: uniform(-stdv, stdv), stdv = 1/sqrt(param.size(-1))."""
    params = []
    dims = [(emb_dim, emb_dim)] * num_mlp_layers + [(emb_dim, num_classes)]
    for (in_dim, out_dim) in dims:
        key, kw, kb = jax.random.split(key, 3)
        stdv_w = 1.0 / math.sqrt(in_dim)     # weight.size(-1) = in_features
        stdv_b = 1.0 / math.sqrt(out_dim)    # bias.size(-1)   = out_features
        w = jax.random.uniform(kw, (in_dim, out_dim), jnp.float32, -stdv_w, stdv_w)
        b = jax.random.uniform(kb, (1, out_dim), jnp.float32, -stdv_b, stdv_b)
        params.append((w, b))
    return params


def reference_forward(graph_emb, params, num_mlp_layers):
    """bf16-operand / f32-accum reference matching the kernel's MXU dtype policy."""
    h = graph_emb.astype(jnp.float32)
    for i in range(num_mlp_layers):
        w, b = params[i]
        y = jnp.dot(h.astype(jnp.bfloat16), w.astype(jnp.bfloat16),
                    preferred_element_type=jnp.float32) + b
        h = jnp.maximum(y, 0.0)
    wf, bf = params[-1]
    logits = jnp.dot(h.astype(jnp.bfloat16), wf.astype(jnp.bfloat16),
                     preferred_element_type=jnp.float32) + bf
    return jax.nn.log_softmax(logits, axis=-1)


if __name__ == "__main__":
    key = jax.random.PRNGKey(0)

    # Primary small config -> resident-weight path (dropout = identity, eval mode).
    batch, emb_dim, num_mlp_layers, num_classes = 8, 32, 2, 8
    key, kx, kp = jax.random.split(key, 3)
    graph_emb = jax.random.normal(kx, (batch, emb_dim), jnp.float32)
    params = init_params(kp, emb_dim, num_mlp_layers, num_classes)

    probs = mlp_decoder_forward(graph_emb, params, num_mlp_layers)
    jax.block_until_ready(probs)
    ref = reference_forward(graph_emb, params, num_mlp_layers)
    assert probs.shape == (batch, num_classes)
    assert jnp.allclose(probs, ref, atol=2e-3, rtol=2e-3), "resident path mismatch"

    # Also exercise the layer-outer streaming fallback (multi batch-tile).
    batch2, emb2, L2, nc2 = 264, 64, 2, 16
    key, kx2, kp2 = jax.random.split(key, 3)
    x2 = jax.random.normal(kx2, (batch2, emb2), jnp.float32)
    params2 = init_params(kp2, emb2, L2, nc2)
    probs2 = mlp_decoder_forward(x2, params2, L2, force_streaming=True)
    jax.block_until_ready(probs2)
    ref2 = reference_forward(x2, params2, L2)
    assert probs2.shape == (batch2, nc2)
    assert jnp.allclose(probs2, ref2, atol=2e-3, rtol=2e-3), "streaming path mismatch"

    print("KERNEL_OK")
</pallas_src>

<mosaic_0001>
module attributes {stable_mosaic.version = 11 : i64} {
  func.func @_mlp_resident_kernel(%arg0: i32, %arg1: memref<8x32xbf16, #tpu.memory_space<vmem>>, %arg2: memref<2x32x32xbf16, #tpu.memory_space<vmem>>, %arg3: memref<2x1x32xf32, #tpu.memory_space<vmem>>, %arg4: memref<32x128xbf16, #tpu.memory_space<vmem>>, %arg5: memref<1x128xf32, #tpu.memory_space<vmem>>, %arg6: memref<8x128xf32, #tpu.memory_space<vmem>>) attributes {dimension_semantics = [#tpu.dimension_semantics<parallel>], iteration_bounds = array<i64: 1>, scalar_prefetch = 0 : i64, scratch_operands = 0 : i64, tpu.core_type = #tpu.core_type<tc>, window_params = [{transform_indices = @transform_0, window_bounds = array<i64: 8, 32>}, {pipeline_mode = #tpu.pipeline_mode<synchronous>, transform_indices = @transform_1, window_bounds = array<i64: 2, 32, 32>}, {pipeline_mode = #tpu.pipeline_mode<synchronous>, transform_indices = @transform_2, window_bounds = array<i64: 2, 1, 32>}, {pipeline_mode = #tpu.pipeline_mode<synchronous>, transform_indices = @transform_3, window_bounds = array<i64: 32, 128>}, {pipeline_mode = #tpu.pipeline_mode<synchronous>, transform_indices = @transform_4, window_bounds = array<i64: 1, 128>}, {transform_indices = @transform_5, window_bounds = array<i64: 8, 128>}]} {
    %c0 = arith.constant 0 : index
    %c0_0 = arith.constant 0 : index
    %0 = vector.load %arg1[%c0, %c0_0] : memref<8x32xbf16, #tpu.memory_space<vmem>>, vector<8x32xbf16>
    %c0_1 = arith.constant 0 : index
    %c0_2 = arith.constant 0 : index
    %c0_3 = arith.constant 0 : index
    %1 = vector.load %arg2[%c0_1, %c0_2, %c0_3] : memref<2x32x32xbf16, #tpu.memory_space<vmem>>, vector<1x32x32xbf16>
    %2 = vector.shape_cast %1 : vector<1x32x32xbf16> to vector<32x32xbf16>
    %cst = arith.constant dense<0.000000e+00> : vector<8x32xf32>
    %3 = tpu.matmul %0, %2, %cst {dimension_numbers = #tpu.dot_dimension_numbers<[1], [0], [0], [1], [0, 0, 1, 1], [], []>} : vector<8x32xbf16>, vector<32x32xbf16>, vector<8x32xf32> -> vector<8x32xf32>
    %c0_4 = arith.constant 0 : index
    %c0_5 = arith.constant 0 : index
    %c0_6 = arith.constant 0 : index
    %4 = vector.load %arg3[%c0_4, %c0_5, %c0_6] : memref<2x1x32xf32, #tpu.memory_space<vmem>>, vector<1x1x32xf32>
    %5 = vector.shape_cast %4 : vector<1x1x32xf32> to vector<1x32xf32>
    %6 = vector.broadcast %5 : vector<1x32xf32> to vector<8x32xf32>
    %7 = arith.addf %3, %6 : vector<8x32xf32>
    %cst_7 = arith.constant 0.000000e+00 : f32
    %8 = vector.broadcast %cst_7 : f32 to vector<8x32xf32>
    %9 = arith.maximumf %7, %8 : vector<8x32xf32>
    %10 = arith.truncf %9 : vector<8x32xf32> to vector<8x32xbf16>
    %c1 = arith.constant 1 : index
    %c0_8 = arith.constant 0 : index
    %c0_9 = arith.constant 0 : index
    %11 = vector.load %arg2[%c1, %c0_8, %c0_9] : memref<2x32x32xbf16, #tpu.memory_space<vmem>>, vector<1x32x32xbf16>
    %12 = vector.shape_cast %11 : vector<1x32x32xbf16> to vector<32x32xbf16>
    %cst_10 = arith.constant dense<0.000000e+00> : vector<8x32xf32>
    %13 = tpu.matmul %10, %12, %cst_10 {dimension_numbers = #tpu.dot_dimension_numbers<[1], [0], [0], [1], [0, 0, 1, 1], [], []>} : vector<8x32xbf16>, vector<32x32xbf16>, vector<8x32xf32> -> vector<8x32xf32>
    %c1_11 = arith.constant 1 : index
    %c0_12 = arith.constant 0 : index
    %c0_13 = arith.constant 0 : index
    %14 = vector.load %arg3[%c1_11, %c0_12, %c0_13] : memref<2x1x32xf32, #tpu.memory_space<vmem>>, vector<1x1x32xf32>
    %15 = vector.shape_cast %14 : vector<1x1x32xf32> to vector<1x32xf32>
    %16 = vector.broadcast %15 : vector<1x32xf32> to vector<8x32xf32>
    %17 = arith.addf %13, %16 : vector<8x32xf32>
    %cst_14 = arith.constant 0.000000e+00 : f32
    %18 = vector.broadcast %cst_14 : f32 to vector<8x32xf32>
    %19 = arith.maximumf %17, %18 : vector<8x32xf32>
    %20 = arith.truncf %19 : vector<8x32xf32> to vector<8x32xbf16>
    %c0_15 = arith.constant 0 : index
    %c0_16 = arith.constant 0 : index
    %21 = vector.load %arg4[%c0_15, %c0_16] : memref<32x128xbf16, #tpu.memory_space<vmem>>, vector<32x128xbf16>
    %cst_17 = arith.constant dense<0.000000e+00> : vector<8x128xf32>
    %22 = tpu.matmul %20, %21, %cst_17 {dimension_numbers = #tpu.dot_dimension_numbers<[1], [0], [0], [1], [0, 0, 1, 1], [], []>} : vector<8x32xbf16>, vector<32x128xbf16>, vector<8x128xf32> -> vector<8x128xf32>
    %c0_18 = arith.constant 0 : index
    %c0_19 = arith.constant 0 : index
    %23 = vector.load %arg5[%c0_18, %c0_19] : memref<1x128xf32, #tpu.memory_space<vmem>>, vector<1x128xf32>
    %24 = vector.broadcast %23 : vector<1x128xf32> to vector<8x128xf32>
    %25 = arith.addf %22, %24 : vector<8x128xf32>
    %cst_20 = arith.constant dense<0xFF800000> : vector<8xf32>
    %26 = vector.multi_reduction <maximumf>, %25, %cst_20 [1] : vector<8x128xf32> to vector<8xf32>
    %27 = vector.shape_cast %26 : vector<8xf32> to vector<8x1xf32>
    %28 = vector.broadcast %27 : vector<8x1xf32> to vector<8x128xf32>
    %29 = arith.subf %25, %28 : vector<8x128xf32>
    %30 = math.exp %29 : vector<8x128xf32>
    %cst_21 = arith.constant dense<0.000000e+00> : vector<8xf32>
    %31 = vector.multi_reduction <add>, %30, %cst_21 [1] : vector<8x128xf32> to vector<8xf32>
    %32 = vector.shape_cast %31 : vector<8xf32> to vector<8x1xf32>
    %33 = math.log %32 : vector<8x1xf32>
    %34 = vector.broadcast %33 : vector<8x1xf32> to vector<8x128xf32>
    %35 = arith.subf %29, %34 : vector<8x128xf32>
    %c0_22 = arith.constant 0 : index
    %c0_23 = arith.constant 0 : index
    %36 = vector.load %arg6[%c0_22, %c0_23] : memref<8x128xf32, #tpu.memory_space<vmem>>, vector<8x128xf32>
    tpu.vector_store %arg6[%c0_22, %c0_23], %35 {strides = array<i32>} : memref<8x128xf32, #tpu.memory_space<vmem>>, vector<8x128xf32>,
    return
  }
  func.func @transform_0(%arg0: i32) -> (i32, i32) {
    %c0_i32 = arith.constant 0 : i32
    %c0_i32_0 = arith.constant 0 : i32
    return %arg0, %c0_i32 : i32, i32
  }
  func.func @transform_1(%arg0: i32) -> (i32, i32, i32) {
    %c0_i32 = arith.constant 0 : i32
    %c0_i32_0 = arith.constant 0 : i32
    %c0_i32_1 = arith.constant 0 : i32
    %c0_i32_2 = arith.constant 0 : i32
    return %c0_i32, %c0_i32_0, %c0_i32_1 : i32, i32, i32
  }
  func.func @transform_2(%arg0: i32) -> (i32, i32, i32) {
    %c0_i32 = arith.constant 0 : i32
    %c0_i32_0 = arith.constant 0 : i32
    %c0_i32_1 = arith.constant 0 : i32
    %c0_i32_2 = arith.constant 0 : i32
    return %c0_i32, %c0_i32_0, %c0_i32_1 : i32, i32, i32
  }
  func.func @transform_3(%arg0: i32) -> (i32, i32) {
    %c0_i32 = arith.constant 0 : i32
    %c0_i32_0 = arith.constant 0 : i32
    %c0_i32_1 = arith.constant 0 : i32
    return %c0_i32, %c0_i32_0 : i32, i32
  }
  func.func @transform_4(%arg0: i32) -> (i32, i32) {
    %c0_i32 = arith.constant 0 : i32
    %c0_i32_0 = arith.constant 0 : i32
    %c0_i32_1 = arith.constant 0 : i32
    return %c0_i32, %c0_i32_0 : i32, i32
  }
  func.func @transform_5(%arg0: i32) -> (i32, i32) {
    %c0_i32 = arith.constant 0 : i32
    %c0_i32_0 = arith.constant 0 : i32
    return %arg0, %c0_i32 : i32, i32
  }
}

</mosaic_0001>

<llo_original>
// kernel: tpu_custom_call.1
$region0: #{tpu_custom_call.1}
  #allocation0 [shape = 'u32[]', space=smem, size = 0x4, offset = 0x4, fixed_abs, tag = 'smem constant byte address 0x4 - core index']
  #allocation1 [shape = 'u32[144,128]{1,0:T(1,128)}', space=vmem, size = 0x12000, scoped, tag = 'internal scratch']
  %s0 = inlined_call_operand.hbm [shape: bf16[8,32], index: 0, kind: input, shape index: {}]
  %s1 = inlined_call_operand.hbm [shape: bf16[2,32,32], index: 1, kind: input, shape index: {}]
  %s2 = inlined_call_operand.vmem [shape: f32[2,1,32], index: 2, kind: input, shape index: {}]
  %s3 = inlined_call_operand.hbm [shape: bf16[32,128], index: 3, kind: input, shape index: {}]
  %s4 = inlined_call_operand.vmem [shape: f32[1,128], index: 4, kind: input, shape index: {}]
  %s5 = inlined_call_operand.hbm [shape: f32[8,128], index: 5, kind: output, shape index: {}]
  %s6 = sld [smem:[#allocation0]]
  $region42: #{tpu_custom_call.1} parent=0
    _
  %s8 = ssub.s32 1, %s6
  %s9 = scalar_select 0, %s8, %s6
  $region1: #{tpu_custom_call.1} parent=0
    #allocation2 [shape = 'u8[2048]{0}', space=vmem, size = 0x800, scoped, tag = 'input window, operand 0, single buffered']
    #allocation3 [shape = 's32[1]{0}', space=sflag, size = 0x4, scoped, tag = 'scoped memory for tpu_custom_call.1']
    #allocation4 [shape = 's32[1]{0}', space=sflag, size = 0x4, scoped, tag = 'scoped memory for tpu_custom_call.1']
    #allocation5 [shape = 'u8[16384]{0}', space=vmem, size = 0x4000, scoped, tag = 'input window, operand 1, single buffered']
    #allocation6 [shape = 's32[1]{0}', space=sflag, size = 0x4, scoped, tag = 'scoped memory for tpu_custom_call.1']
    #allocation7 [shape = 'u8[8192]{0}', space=vmem, size = 0x2000, scoped, tag = 'input window, operand 3, single buffered']
    #allocation8 [shape = 'u8[4096]{0}', space=vmem, size = 0x1000, scoped, tag = 'output window, operand 0, single buffered']
    %10 = vsyncpa [#allocation3], 0
    %11 = vsyncpa [#allocation6], 0
    %12 = vsyncpa [#allocation4], 0
    // Predicated region
    $region2: #{tpu_custom_call.1} parent=1 // pred_check
      _
    $region3: #{tpu_custom_call.1} parent=1 // pred_check_branch
      %14 = sbr.rel (0) target = $region5
    $region4: #{tpu_custom_call.1} parent=1 // pred_region
      %s16 = ssub.s32 64, 64
      %17 = vsyncadd [#allocation3], %s16
      %s19 = sshll.u32 [#allocation2], 4
      %s20 = int_to_ptr.vmem [resolvable:$true] %s19
      %22 = dma.hbm_to_vmem [thread:$0]  %s0, 64, %s20, [#allocation3]
    $region5: #{tpu_custom_call.1} parent=1 // pred_fallthru
      _
    // Predicated region
    $region6: #{tpu_custom_call.1} parent=1 // pred_check
      _
    $region7: #{tpu_custom_call.1} parent=1 // pred_check_branch
      %24 = sbr.rel (0) target = $region9
    $region8: #{tpu_custom_call.1} parent=1 // pred_region
      %s26 = ssub.s32 512, 512
      %27 = vsyncadd [#allocation6], %s26
      %s28 = sshll.u32 [#allocation5], 4
      %s29 = int_to_ptr.vmem [resolvable:$true] %s28
      %34 = dma.hbm_to_vmem [thread:$0]  %s1, 512, %s29, [#allocation6], 64, 64, 4
    $region9: #{tpu_custom_call.1} parent=1 // pred_fallthru
      _
    // Predicated region
    $region10: #{tpu_custom_call.1} parent=1 // pred_check
      _
    $region11: #{tpu_custom_call.1} parent=1 // pred_check_branch
      %36 = sbr.rel (0) target = $region13
    $region12: #{tpu_custom_call.1} parent=1 // pred_region
      _
    $region13: #{tpu_custom_call.1} parent=1 // pred_fallthru
      _
    // Predicated region
    $region14: #{tpu_custom_call.1} parent=1 // pred_check
      _
    $region15: #{tpu_custom_call.1} parent=1 // pred_check_branch
      %38 = sbr.rel (0) target = $region17
    $region16: #{tpu_custom_call.1} parent=1 // pred_region
      %s40 = ssub.s32 256, 256
      %41 = vsyncadd [#allocation6], %s40
      %s42 = sshll.u32 [#allocation7], 4
      %s43 = int_to_ptr.vmem [resolvable:$true] %s42
      %48 = dma.hbm_to_vmem [thread:$0]  %s3, 256, %s43, [#allocation6], 64, 64, 4
    $region17: #{tpu_custom_call.1} parent=1 // pred_fallthru
      _
    // Predicated region
    $region18: #{tpu_custom_call.1} parent=1 // pred_check
      _
    $region19: #{tpu_custom_call.1} parent=1 // pred_check_branch
      %50 = sbr.rel (0) target = $region21
    $region20: #{tpu_custom_call.1} parent=1 // pred_region
      _
    $region21: #{tpu_custom_call.1} parent=1 // pred_fallthru
      _
    // Predicated region
    $region22: #{tpu_custom_call.1} parent=1 // pred_check
      _
    $region23: #{tpu_custom_call.1} parent=1 // pred_check_branch
      %52 = sbr.rel (0) target = $region25
    $region24: #{tpu_custom_call.1} parent=1 // pred_region
      %53 = dma.done [#allocation3], 64
    $region25: #{tpu_custom_call.1} parent=1 // pred_fallthru
      _
    // Predicated region
    $region26: #{tpu_custom_call.1} parent=1 // pred_check
      _
    $region27: #{tpu_custom_call.1} parent=1 // pred_check_branch
      %55 = sbr.rel (0) target = $region29
    $region28: #{tpu_custom_call.1} parent=1 // pred_region
      %56 = dma.done [#allocation6], 512
    $region29: #{tpu_custom_call.1} parent=1 // pred_fallthru
      _
    // Predicated region
    $region30: #{tpu_custom_call.1} parent=1 // pred_check
      _
    $region31: #{tpu_custom_call.1} parent=1 // pred_check_branch
      %58 = sbr.rel (0) target = $region33
    $region32: #{tpu_custom_call.1} parent=1 // pred_region
      %59 = dma.done [#allocation6], 256
    $region33: #{tpu_custom_call.1} parent=1 // pred_fallthru
      _
    %v61 = vld [vmem:[#allocation2] sm:$0xf]
    %v62 = vld [vmem:[#allocation5] sm:$0xf]
    %v63 = vld [vmem:[#allocation5 + $0x4] sm:$0xf]
    %v64 = vld [vmem:[#allocation5 + $0x8] sm:$0xf]
    %v65 = vld [vmem:[#allocation5 + $0xc] sm:$0xf]
    %v66 = vld [vmem:[%s2] sm:$0x1]
    %v68 = vlaneseq
    %v69 = vshrl.u32 %v68, 7
    %v70 = vsub.s32 0, %v69
    %v71 = vrot.slane %v66, %v70
    %v77 = vunpack.c.l.b16 %v62
    %v78 = vunpack.c.l.b16 %v63
    %v79 = vunpack.c.l.b16 %v64
    %v80 = vunpack.c.l.b16 %v65
    %v81 = vpack.c.b16 %v78, %v77
    %v82 = vpack.c.b16 %v80, %v79
    %vm85 = vcmask 261120
    %v87 = vsel %vm85, %v61, 0
    %89 = vmatprep.subr.bf16.mxu0 0
    %90 = vmatpush1.bf16.msra.mxu0 %v81
    %91 = vmatprep.subr.bf16.mxu0 0
    %92 = vmatpush1.bf16.msra.mxu0 %v82
    %93 = vmatprep.subr.bf16.mxu0 0
    %94 = vmatpush1.bf16.msra.mxu0 0
    %95 = vmatprep.subr.bf16.mxu0 0
    %96 = vmatpush1.bf16.msra.mxu0 0
    %97 = vmatprep.subr.bf16.mxu0 0
    %98 = vmatpush1.bf16.msra.mxu0 0
    %99 = vmatprep.subr.bf16.mxu0 0
    %100 = vmatpush1.bf16.msra.mxu0 0
    %101 = vmatprep.subr.bf16.mxu0 0
    %102 = vmatpush1.bf16.msra.mxu0 0
    %103 = vmatprep.subr.bf16.mxu0 0
    %104 = vmatpush1.bf16.msra.mxu0 0
    %105 = vmatprep.subr.bf16.mxu0 0
    %106 = vmatpush1.bf16.msra.mxu0 0
    %107 = vmatprep.subr.bf16.mxu0 0
    %108 = vmatpush1.bf16.msra.mxu0 0
    %109 = vmatprep.subr.bf16.mxu0 0
    %110 = vmatpush1.bf16.msra.mxu0 0
    %111 = vmatprep.subr.bf16.mxu0 0
    %112 = vmatpush1.bf16.msra.mxu0 0
    %113 = vmatprep.subr.bf16.mxu0 0
    %114 = vmatpush1.bf16.msra.mxu0 0
    %115 = vmatprep.subr.bf16.mxu0 0
    %116 = vmatpush1.bf16.msra.mxu0 0
    %117 = vmatprep.subr.bf16.mxu0 0
    %118 = vmatpush1.bf16.msra.mxu0 0
    %119 = vmatprep.subr.bf16.mxu0 0
    %120 = vmatpush1.bf16.msra.mxu0 0
    %121 = vmatprep.mubr.bf16.mxu0 0
    %122 = vmatmul.mubr.bf16.gmra.mrb[0].mxu0 %v87
    %v123 = vpop.f32.mrb[0].mxu0
    %v124 = vadd.f32 %v71, %v123
    %v125 = vpop.f32.mrb[0].mxu0
    %v126 = vpop.f32.mrb[0].mxu0
    %v127 = vpop.f32.mrb[0].mxu0
    %128 = vdwg.mxu0
    %v129 = vmax.f32 %v124, 0.0
    %v130 = vpack.c.bf16 %v129, %v129
    %s131 = scalar_lea.vmem [#allocation5], 16
    %v132 = vld [vmem:[%s131] sm:$0xf]
    %v133 = vld [vmem:[%s131 + $0x4] sm:$0xf]
    %v134 = vld [vmem:[%s131 + $0x8] sm:$0xf]
    %v135 = vld [vmem:[%s131 + $0xc] sm:$0xf]
    %s136 = scalar_lea.vmem %s2, 1
    %v137 = vld [vmem:[%s136] sm:$0x1]
    %v139 = vlaneseq
    %v140 = vshrl.u32 %v139, 7
    %v141 = vsub.s32 0, %v140
    %v142 = vrot.slane %v137, %v141
    %v148 = vunpack.c.l.b16 %v132
    %v149 = vunpack.c.l.b16 %v133
    %v150 = vunpack.c.l.b16 %v134
    %v151 = vunpack.c.l.b16 %v135
    %v152 = vpack.c.b16 %v149, %v148
    %v153 = vpack.c.b16 %v151, %v150
    %v157 = vsel %vm85, %v130, 0
    %159 = vmatprep.subr.bf16.mxu0 0
    %160 = vmatpush1.bf16.msra.mxu0 %v152
    %161 = vmatprep.subr.bf16.mxu0 0
    %162 = vmatpush1.bf16.msra.mxu0 %v153
    %163 = vmatprep.subr.bf16.mxu0 0
    %164 = vmatpush1.bf16.msra.mxu0 0
    %165 = vmatprep.subr.bf16.mxu0 0
    %166 = vmatpush1.bf16.msra.mxu0 0
    %167 = vmatprep.subr.bf16.mxu0 0
    %168 = vmatpush1.bf16.msra.mxu0 0
    %169 = vmatprep.subr.bf16.mxu0 0
    %170 = vmatpush1.bf16.msra.mxu0 0
    %171 = vmatprep.subr.bf16.mxu0 0
    %172 = vmatpush1.bf16.msra.mxu0 0
    %173 = vmatprep.subr.bf16.mxu0 0
    %174 = vmatpush1.bf16.msra.mxu0 0
    %175 = vmatprep.subr.bf16.mxu0 0
    %176 = vmatpush1.bf16.msra.mxu0 0
    %177 = vmatprep.subr.bf16.mxu0 0
    %178 = vmatpush1.bf16.msra.mxu0 0
    %179 = vmatprep.subr.bf16.mxu0 0
    %180 = vmatpush1.bf16.msra.mxu0 0
    %181 = vmatprep.subr.bf16.mxu0 0
    %182 = vmatpush1.bf16.msra.mxu0 0
    %183 = vmatprep.subr.bf16.mxu0 0
    %184 = vmatpush1.bf16.msra.mxu0 0
    %185 = vmatprep.subr.bf16.mxu0 0
    %186 = vmatpush1.bf16.msra.mxu0 0
    %187 = vmatprep.subr.bf16.mxu0 0
    %188 = vmatpush1.bf16.msra.mxu0 0
    %189 = vmatprep.subr.bf16.mxu0 0
    %190 = vmatpush1.bf16.msra.mxu0 0
    %191 = vmatprep.mubr.bf16.mxu0 0
    %192 = vmatmul.mubr.bf16.gmra.mrb[0].mxu0 %v157
    %v193 = vpop.f32.mrb[0].mxu0
    %v194 = vadd.f32 %v142, %v193
    %v195 = vpop.f32.mrb[0].mxu0
    %v196 = vpop.f32.mrb[0].mxu0
    %v197 = vpop.f32.mrb[0].mxu0
    %198 = vdwg.mxu0
    %v199 = vmax.f32 %v194, 0.0
    %v200 = vpack.c.bf16 %v199, %v199
    %v201 = vld [vmem:[#allocation7] sm:$0xf]
    %v202 = vld [vmem:[#allocation7 + $0x4] sm:$0xf]
    %v203 = vld [vmem:[#allocation7 + $0x8] sm:$0xf]
    %v204 = vld [vmem:[#allocation7 + $0xc] sm:$0xf]
    %v205 = vld [vmem:[%s4] sm:$0x1]
    %v207 = vlaneseq
    %v208 = vshrl.u32 %v207, 7
    %v209 = vsub.s32 0, %v208
    %v210 = vrot.slane %v205, %v209
    %v216 = vunpack.c.l.b16 %v201
    %v217 = vunpack.c.l.b16 %v202
    %v218 = vunpack.c.l.b16 %v203
    %v219 = vunpack.c.l.b16 %v204
    %v220 = vpack.c.b16 %v217, %v216
    %v221 = vpack.c.b16 %v219, %v218
    %v225 = vsel %vm85, %v200, 0
    %227 = vmatprep.subr.bf16.mxu0 0
    %228 = vmatpush1.bf16.msra.mxu0 %v220
    %229 = vmatprep.subr.bf16.mxu0 0
    %230 = vmatpush1.bf16.msra.mxu0 %v221
    %231 = vmatprep.subr.bf16.mxu0 0
    %232 = vmatpush1.bf16.msra.mxu0 0
    %233 = vmatprep.subr.bf16.mxu0 0
    %234 = vmatpush1.bf16.msra.mxu0 0
    %235 = vmatprep.subr.bf16.mxu0 0
    %236 = vmatpush1.bf16.msra.mxu0 0
    %237 = vmatprep.subr.bf16.mxu0 0
    %238 = vmatpush1.bf16.msra.mxu0 0
    %239 = vmatprep.subr.bf16.mxu0 0
    %240 = vmatpush1.bf16.msra.mxu0 0
    %241 = vmatprep.subr.bf16.mxu0 0
    %242 = vmatpush1.bf16.msra.mxu0 0
    %243 = vmatprep.subr.bf16.mxu0 0
    %244 = vmatpush1.bf16.msra.mxu0 0
    %245 = vmatprep.subr.bf16.mxu0 0
    %246 = vmatpush1.bf16.msra.mxu0 0
    %247 = vmatprep.subr.bf16.mxu0 0
    %248 = vmatpush1.bf16.msra.mxu0 0
    %249 = vmatprep.subr.bf16.mxu0 0
    %250 = vmatpush1.bf16.msra.mxu0 0
    %251 = vmatprep.subr.bf16.mxu0 0
    %252 = vmatpush1.bf16.msra.mxu0 0
    %253 = vmatprep.subr.bf16.mxu0 0
    %254 = vmatpush1.bf16.msra.mxu0 0
    %255 = vmatprep.subr.bf16.mxu0 0
    %256 = vmatpush1.bf16.msra.mxu0 0
    %257 = vmatprep.subr.bf16.mxu0 0
    %258 = vmatpush1.bf16.msra.mxu0 0
    %259 = vmatprep.mubr.bf16.mxu0 0
    %260 = vmatmul.mubr.bf16.gmra.mrb[0].mxu0 %v225
    %v261 = vpop.f32.mrb[0].mxu0
    %v262 = vadd.f32 %v210, %v261
    %v263 = vpop.f32.mrb[0].mxu0
    %v264 = vpop.f32.mrb[0].mxu0
    %v265 = vpop.f32.mrb[0].mxu0
    %266 = vdwg.mxu0
    %267 = vmax.xlane.f32.xlu0 %v262
    %v268 = vpop.xlane.xlu0 %267
    %v269 = vsub.f32 %v262, %v268
    %v270 = vmul.f32 %v269, 1.442695
    %v271 = vpow.pop %v270
    %272 = vadd.xlane.f32.xlu0 %v271
    %v273 = vpop.xlane.xlu0 %272
    %v274 = vlog2.pop %v273
    %v275 = vmul.f32 %v274, 0.6931472
    %v276 = vsub.f32 %v269, %v275
    %277 = vst [vmem:[#allocation8] sm:$0xff] %v276
    // Predicated region
    $region34: #{tpu_custom_call.1} parent=1 // pred_check
      _
    $region35: #{tpu_custom_call.1} parent=1 // pred_check_branch
      %279 = sbr.rel (0) target = $region37
    $region36: #{tpu_custom_call.1} parent=1 // pred_region
      %s281 = ssub.s32 128, 128
      %282 = vsyncadd [#allocation4], %s281
      %s284 = sshll.u32 [#allocation8], 4
      %s285 = int_to_ptr.vmem [resolvable:$true] %s284
      %287 = dma.vmem_to_hbm [thread:$0]  %s285, 128, %s5, [#allocation4]
    $region37: #{tpu_custom_call.1} parent=1 // pred_fallthru
      _
    // Predicated region
    $region38: #{tpu_custom_call.1} parent=1 // pred_check
      _
    $region39: #{tpu_custom_call.1} parent=1 // pred_check_branch
      %289 = sbr.rel (0) target = $region41
    $region40: #{tpu_custom_call.1} parent=1 // pred_region
      %290 = dma.done [#allocation4], 128
    $region41: #{tpu_custom_call.1} parent=1 // pred_fallthru
      _
    %291 = vsyncpa [#allocation3], 1
    %292 = vsyncpa [#allocation6], 1
    %293 = vsyncpa [#allocation4], 1

</llo_original>
